<compile_context>
chip_gen: v5e
topology: v5e:2x2
jax: 0.10.0
libtpu: 0.0.40
codegen_flags: <defaults>
</compile_context>

<pallas_src>
import jax
import jax.numpy as jnp
from jax.experimental import pallas as pl
from jax.experimental.pallas import tpu as pltpu


def _gca_kernel(text_ref, img_ref, ft_ref, fi_ref):
    # f32 accumulation even if inputs arrive as bf16.
    text = text_ref[...].astype(jnp.float32)      # (Bt, L, H)
    img = img_ref[...].astype(jnp.float32)        # (Bt, R, H)
    Bt, L, H = text.shape
    R = img.shape[1]

    # softmax of a row-constant score is exactly uniform -> attention == mean.
    mean_t = (jnp.sum(text, axis=1) * (1.0 / L)).astype(ft_ref.dtype)   # (Bt, H)
    mean_i = (jnp.sum(img, axis=1) * (1.0 / R)).astype(fi_ref.dtype)    # (Bt, H)

    # Replicate the H-wide mean R times across the lane dimension of the
    # resident (1, Bt, R*H) output block with static-offset stores (R*H = 128
    # here, so the HBM writeback is a dense, unmasked 128-lane row).  No MXU.
    for r in range(R):  # static unroll, R is tiny
        ft_ref[0, :, pl.ds(r * H, H)] = mean_t
        fi_ref[0, :, pl.ds(r * H, H)] = mean_i


def _num_tensorcores_per_chip():
    """2 on v7x (dual-TC), 1 on v5e/v6e; conservative default 1."""
    try:
        kind = jax.devices()[0].device_kind.lower()
    except Exception:
        return 1
    return 2 if "v7" in kind else 1


def gated_cross_attention(text, img, params=None):
    """text: (B, L, H), img: (B, R, H) -> (f_t_hat, f_ei_hat), each (B, R, H).

    `params` (W1, b1, att1, W2, b2, att2 weights/biases) are accepted for API
    parity with the PyTorch module but provably cannot affect the outputs
    (row-constant pre-softmax scores), so they are not read by the kernel.
    """
    del params  # dead gate path — see module header comment.
    B, L, H = text.shape
    _, R, _ = img.shape

    # Generation-aware batch split: only pay an extra grid step when there is
    # a second TensorCore to run it on (v7x); single step on v5e/v6e.
    n_tc = _num_tensorcores_per_chip()
    nb = 2 if (n_tc == 2 and B >= 2 and B % 2 == 0) else 1
    Bt = B // nb

    grid_spec = pltpu.PrefetchScalarGridSpec(
        num_scalar_prefetch=0,
        grid=(nb,),
        in_specs=[
            pl.BlockSpec((Bt, L, H), lambda b: (b, 0, 0)),   # text
            pl.BlockSpec((Bt, R, H), lambda b: (b, 0, 0)),   # img
        ],
        out_specs=[
            pl.BlockSpec((1, Bt, R * H), lambda b: (b, 0, 0)),
            pl.BlockSpec((1, Bt, R * H), lambda b: (b, 0, 0)),
        ],
    )
    out_shape = (
        jax.ShapeDtypeStruct((nb, Bt, R * H), text.dtype),
        jax.ShapeDtypeStruct((nb, Bt, R * H), text.dtype),
    )

    ft2d, fi2d = pl.pallas_call(
        _gca_kernel,
        grid_spec=grid_spec,
        out_shape=out_shape,
        compiler_params=pltpu.CompilerParams(
            dimension_semantics=("parallel",)),
    )(text, img)

    # Layout plumbing only (metadata reshape): (nb, Bt, R*H) -> (B, R, H).
    return ft2d.reshape(B, R, H), fi2d.reshape(B, R, H)


def _init_params(key, H):
    ks = jax.random.split(key, 8)
    scale = 1.0 / jnp.sqrt(H)
    w1t = jax.random.uniform(ks[0], (H, H), jnp.float32, -scale, scale)   # W1^T
    b1 = jax.random.uniform(ks[1], (1, H), jnp.float32, -scale, scale)
    a1 = jax.random.uniform(ks[2], (1, H), jnp.float32, -scale, scale)    # att_linear_1 weight
    ba1 = jax.random.uniform(ks[3], (1, 1), jnp.float32, -scale, scale)
    w2t = jax.random.uniform(ks[4], (H, H), jnp.float32, -scale, scale)   # W2^T
    b2 = jax.random.uniform(ks[5], (1, H), jnp.float32, -scale, scale)
    a2 = jax.random.uniform(ks[6], (1, H), jnp.float32, -scale, scale)    # att_linear_2 weight
    ba2 = jax.random.uniform(ks[7], (1, 1), jnp.float32, -scale, scale)
    return (w1t, b1, a1, ba1, w2t, b2, a2, ba2)


def _reference(text, img, params):
    """Pure-JAX reference mirroring the PyTorch forward (with the redundant repeats)."""
    w1t, b1, a1, ba1, w2t, b2, a2, ba2 = params
    B, L, H = text.shape
    _, R, _ = img.shape
    img_rep = jnp.broadcast_to(img[:, :, None, :], (B, R, L, H))
    c_t = jax.nn.sigmoid(img_rep @ w1t + b1[0])
    alpha_t = jax.nn.softmax(jnp.einsum('brlh,h->brl', c_t, a1[0]) + ba1[0, 0], axis=-1)
    f_t_hat = jnp.einsum('brl,blh->brh', alpha_t, text)
    text_rep = jnp.broadcast_to(f_t_hat[:, :, None, :], (B, R, R, H))
    c_i = jax.nn.sigmoid(text_rep @ w2t + b2[0])
    alpha_i = jax.nn.softmax(jnp.einsum('brkh,h->brk', c_i, a2[0]) + ba2[0, 0], axis=-1)
    f_ei_hat = jnp.einsum('brk,bkh->brh', alpha_i, img)
    return f_t_hat, f_ei_hat


if __name__ == "__main__":
    B, L, R, H = 2, 8, 4, 32   # batch, max_seq_len, num_img_region, hidden_dim
    key = jax.random.PRNGKey(0)
    k_text, k_img, k_params = jax.random.split(key, 3)

    text = jax.random.normal(k_text, (B, L, H), jnp.float32)
    img = jax.random.normal(k_img, (B, R, H), jnp.float32)
    params = _init_params(k_params, H)

    f_t_hat, f_ei_hat = gated_cross_attention(text, img, params)
    jax.block_until_ready((f_t_hat, f_ei_hat))

    ref_t, ref_i = _reference(text, img, params)
    assert f_t_hat.shape == (B, R, H) and f_ei_hat.shape == (B, R, H)
    assert jnp.allclose(f_t_hat, ref_t, atol=1e-5, rtol=1e-5)
    assert jnp.allclose(f_ei_hat, ref_i, atol=1e-5, rtol=1e-5)

    print("KERNEL_OK")
</pallas_src>

<mosaic_0001>
module attributes {stable_mosaic.version = 11 : i64} {
  func.func @_gca_kernel(%arg0: i32, %arg1: memref<2x8x32xf32, #tpu.memory_space<vmem>>, %arg2: memref<2x4x32xf32, #tpu.memory_space<vmem>>, %arg3: memref<1x2x128xf32, #tpu.memory_space<vmem>>, %arg4: memref<1x2x128xf32, #tpu.memory_space<vmem>>) attributes {dimension_semantics = [#tpu.dimension_semantics<parallel>], iteration_bounds = array<i64: 1>, scalar_prefetch = 0 : i64, scratch_operands = 0 : i64, tpu.core_type = #tpu.core_type<tc>, window_params = [{transform_indices = @transform_0, window_bounds = array<i64: 2, 8, 32>}, {transform_indices = @transform_1, window_bounds = array<i64: 2, 4, 32>}, {transform_indices = @transform_2, window_bounds = array<i64: 1, 2, 128>}, {transform_indices = @transform_3, window_bounds = array<i64: 1, 2, 128>}]} {
    %c0 = arith.constant 0 : index
    %c0_0 = arith.constant 0 : index
    %c0_1 = arith.constant 0 : index
    %0 = vector.load %arg1[%c0, %c0_0, %c0_1] : memref<2x8x32xf32, #tpu.memory_space<vmem>>, vector<2x8x32xf32>
    %c0_2 = arith.constant 0 : index
    %c0_3 = arith.constant 0 : index
    %c0_4 = arith.constant 0 : index
    %1 = vector.load %arg2[%c0_2, %c0_3, %c0_4] : memref<2x4x32xf32, #tpu.memory_space<vmem>>, vector<2x4x32xf32>
    %cst = arith.constant dense<0.000000e+00> : vector<2x32xf32>
    %2 = vector.multi_reduction <add>, %0, %cst [1] : vector<2x8x32xf32> to vector<2x32xf32>
    %cst_5 = arith.constant 1.250000e-01 : f32
    %3 = vector.broadcast %cst_5 : f32 to vector<2x32xf32>
    %4 = arith.mulf %2, %3 : vector<2x32xf32>
    %cst_6 = arith.constant dense<0.000000e+00> : vector<2x32xf32>
    %5 = vector.multi_reduction <add>, %1, %cst_6 [1] : vector<2x4x32xf32> to vector<2x32xf32>
    %cst_7 = arith.constant 2.500000e-01 : f32
    %6 = vector.broadcast %cst_7 : f32 to vector<2x32xf32>
    %7 = arith.mulf %5, %6 : vector<2x32xf32>
    %c0_8 = arith.constant 0 : index
    %c0_9 = arith.constant 0 : index
    %c0_10 = arith.constant 0 : index
    %8 = vector.load %arg3[%c0_8, %c0_9, %c0_10] : memref<1x2x128xf32, #tpu.memory_space<vmem>>, vector<1x2x32xf32>
    %9 = vector.shape_cast %8 : vector<1x2x32xf32> to vector<2x32xf32>
    %10 = vector.shape_cast %4 : vector<2x32xf32> to vector<1x2x32xf32>
    tpu.vector_store %arg3[%c0_8, %c0_9, %c0_10], %10 {strides = array<i32>} : memref<1x2x128xf32, #tpu.memory_space<vmem>>, vector<1x2x32xf32>,
    %c0_11 = arith.constant 0 : index
    %c0_12 = arith.constant 0 : index
    %c0_13 = arith.constant 0 : index
    %11 = vector.load %arg4[%c0_11, %c0_12, %c0_13] : memref<1x2x128xf32, #tpu.memory_space<vmem>>, vector<1x2x32xf32>
    %12 = vector.shape_cast %11 : vector<1x2x32xf32> to vector<2x32xf32>
    %13 = vector.shape_cast %7 : vector<2x32xf32> to vector<1x2x32xf32>
    tpu.vector_store %arg4[%c0_11, %c0_12, %c0_13], %13 {strides = array<i32>} : memref<1x2x128xf32, #tpu.memory_space<vmem>>, vector<1x2x32xf32>,
    %c0_14 = arith.constant 0 : index
    %c0_15 = arith.constant 0 : index
    %c32 = arith.constant 32 : index
    %14 = vector.load %arg3[%c0_14, %c0_15, %c32] : memref<1x2x128xf32, #tpu.memory_space<vmem>>, vector<1x2x32xf32>
    %15 = vector.shape_cast %14 : vector<1x2x32xf32> to vector<2x32xf32>
    %16 = vector.shape_cast %4 : vector<2x32xf32> to vector<1x2x32xf32>
    tpu.vector_store %arg3[%c0_14, %c0_15, %c32], %16 {strides = array<i32>} : memref<1x2x128xf32, #tpu.memory_space<vmem>>, vector<1x2x32xf32>,
    %c0_16 = arith.constant 0 : index
    %c0_17 = arith.constant 0 : index
    %c32_18 = arith.constant 32 : index
    %17 = vector.load %arg4[%c0_16, %c0_17, %c32_18] : memref<1x2x128xf32, #tpu.memory_space<vmem>>, vector<1x2x32xf32>
    %18 = vector.shape_cast %17 : vector<1x2x32xf32> to vector<2x32xf32>
    %19 = vector.shape_cast %7 : vector<2x32xf32> to vector<1x2x32xf32>
    tpu.vector_store %arg4[%c0_16, %c0_17, %c32_18], %19 {strides = array<i32>} : memref<1x2x128xf32, #tpu.memory_space<vmem>>, vector<1x2x32xf32>,
    %c0_19 = arith.constant 0 : index
    %c0_20 = arith.constant 0 : index
    %c64 = arith.constant 64 : index
    %20 = vector.load %arg3[%c0_19, %c0_20, %c64] : memref<1x2x128xf32, #tpu.memory_space<vmem>>, vector<1x2x32xf32>
    %21 = vector.shape_cast %20 : vector<1x2x32xf32> to vector<2x32xf32>
    %22 = vector.shape_cast %4 : vector<2x32xf32> to vector<1x2x32xf32>
    tpu.vector_store %arg3[%c0_19, %c0_20, %c64], %22 {strides = array<i32>} : memref<1x2x128xf32, #tpu.memory_space<vmem>>, vector<1x2x32xf32>,
    %c0_21 = arith.constant 0 : index
    %c0_22 = arith.constant 0 : index
    %c64_23 = arith.constant 64 : index
    %23 = vector.load %arg4[%c0_21, %c0_22, %c64_23] : memref<1x2x128xf32, #tpu.memory_space<vmem>>, vector<1x2x32xf32>
    %24 = vector.shape_cast %23 : vector<1x2x32xf32> to vector<2x32xf32>
    %25 = vector.shape_cast %7 : vector<2x32xf32> to vector<1x2x32xf32>
    tpu.vector_store %arg4[%c0_21, %c0_22, %c64_23], %25 {strides = array<i32>} : memref<1x2x128xf32, #tpu.memory_space<vmem>>, vector<1x2x32xf32>,
    %c0_24 = arith.constant 0 : index
    %c0_25 = arith.constant 0 : index
    %c96 = arith.constant 96 : index
    %26 = vector.load %arg3[%c0_24, %c0_25, %c96] : memref<1x2x128xf32, #tpu.memory_space<vmem>>, vector<1x2x32xf32>
    %27 = vector.shape_cast %26 : vector<1x2x32xf32> to vector<2x32xf32>
    %28 = vector.shape_cast %4 : vector<2x32xf32> to vector<1x2x32xf32>
    tpu.vector_store %arg3[%c0_24, %c0_25, %c96], %28 {strides = array<i32>} : memref<1x2x128xf32, #tpu.memory_space<vmem>>, vector<1x2x32xf32>,
    %c0_26 = arith.constant 0 : index
    %c0_27 = arith.constant 0 : index
    %c96_28 = arith.constant 96 : index
    %29 = vector.load %arg4[%c0_26, %c0_27, %c96_28] : memref<1x2x128xf32, #tpu.memory_space<vmem>>, vector<1x2x32xf32>
    %30 = vector.shape_cast %29 : vector<1x2x32xf32> to vector<2x32xf32>
    %31 = vector.shape_cast %7 : vector<2x32xf32> to vector<1x2x32xf32>
    tpu.vector_store %arg4[%c0_26, %c0_27, %c96_28], %31 {strides = array<i32>} : memref<1x2x128xf32, #tpu.memory_space<vmem>>, vector<1x2x32xf32>,
    return
  }
  func.func @transform_0(%arg0: i32) -> (i32, i32, i32) {
    %c0_i32 = arith.constant 0 : i32
    %c0_i32_0 = arith.constant 0 : i32
    %c0_i32_1 = arith.constant 0 : i32
    return %arg0, %c0_i32, %c0_i32_0 : i32, i32, i32
  }
  func.func @transform_1(%arg0: i32) -> (i32, i32, i32) {
    %c0_i32 = arith.constant 0 : i32
    %c0_i32_0 = arith.constant 0 : i32
    %c0_i32_1 = arith.constant 0 : i32
    return %arg0, %c0_i32, %c0_i32_0 : i32, i32, i32
  }
  func.func @transform_2(%arg0: i32) -> (i32, i32, i32) {
    %c0_i32 = arith.constant 0 : i32
    %c0_i32_0 = arith.constant 0 : i32
    %c0_i32_1 = arith.constant 0 : i32
    return %arg0, %c0_i32, %c0_i32_0 : i32, i32, i32
  }
  func.func @transform_3(%arg0: i32) -> (i32, i32, i32) {
    %c0_i32 = arith.constant 0 : i32
    %c0_i32_0 = arith.constant 0 : i32
    %c0_i32_1 = arith.constant 0 : i32
    return %arg0, %c0_i32, %c0_i32_0 : i32, i32, i32
  }
}

</mosaic_0001>

<llo_original>
// kernel: tpu_custom_call.1
$region0: #{tpu_custom_call.1}
  #allocation0 [shape = 'u32[]', space=smem, size = 0x4, offset = 0x4, fixed_abs, tag = 'smem constant byte address 0x4 - core index']
  #allocation1 [shape = 'u32[72,128]{1,0:T(1,128)}', space=vmem, size = 0x9000, scoped, tag = 'internal scratch']
  %s0 = inlined_call_operand.hbm [shape: f32[2,8,32], index: 0, kind: input, shape index: {}]
  %s1 = inlined_call_operand.hbm [shape: f32[2,4,32], index: 1, kind: input, shape index: {}]
  %s2 = inlined_call_operand.hbm [shape: f32[1,2,128], index: 2, kind: output, shape index: {0}]
  %s3 = inlined_call_operand.hbm [shape: f32[1,2,128], index: 3, kind: output, shape index: {1}]
  %4 = xla_tuple %s2, %s3
  %s5 = sld [smem:[#allocation0]]
  $region34: #{tpu_custom_call.1} parent=0
    _
  %s7 = ssub.s32 1, %s5
  %s8 = scalar_select 0, %s7, %s5
  $region1: #{tpu_custom_call.1} parent=0
    #allocation2 [shape = 'u8[8192]{0}', space=vmem, size = 0x2000, scoped, tag = 'input window, operand 0, single buffered']
    #allocation3 [shape = 's32[1]{0}', space=sflag, size = 0x4, scoped, tag = 'scoped memory for tpu_custom_call.1']
    #allocation4 [shape = 's32[1]{0}', space=sflag, size = 0x4, scoped, tag = 'scoped memory for tpu_custom_call.1']
    #allocation5 [shape = 'u8[4096]{0}', space=vmem, size = 0x1000, scoped, tag = 'input window, operand 1, single buffered']
    #allocation6 [shape = 's32[1]{0}', space=sflag, size = 0x4, scoped, tag = 'scoped memory for tpu_custom_call.1']
    #allocation7 [shape = 'u8[1024]{0}', space=vmem, size = 0x400, scoped, tag = 'output window, operand 0, single buffered']
    #allocation8 [shape = 'u8[1024]{0}', space=vmem, size = 0x400, scoped, tag = 'output window, operand 1, single buffered']
    #allocation9 [shape = 's32[1]{0}', space=sflag, size = 0x4, scoped, tag = 'scoped memory for tpu_custom_call.1']
    %9 = vsyncpa [#allocation3], 0
    %10 = vsyncpa [#allocation6], 0
    %11 = vsyncpa [#allocation4], 0
    %12 = vsyncpa [#allocation9], 0
    // Predicated region
    $region2: #{tpu_custom_call.1} parent=1 // pred_check
      _
    $region3: #{tpu_custom_call.1} parent=1 // pred_check_branch
      %14 = sbr.rel (0) target = $region5
    $region4: #{tpu_custom_call.1} parent=1 // pred_region
      %16 = vsyncadd [#allocation3], 0
      %s17 = sshll.u32 %s0, 4
      %s18 = int_to_ptr.hbm [resolvable:$true] %s17
      %s19 = sshll.u32 [#allocation2], 4
      %s20 = int_to_ptr.vmem [resolvable:$true] %s19
      %25 = dma.hbm_to_vmem [thread:$0]  %s18, 256, %s20, [#allocation3], 128, 128, 8
    $region5: #{tpu_custom_call.1} parent=1 // pred_fallthru
      _
    // Predicated region
    $region6: #{tpu_custom_call.1} parent=1 // pred_check
      _
    $region7: #{tpu_custom_call.1} parent=1 // pred_check_branch
      %27 = sbr.rel (0) target = $region9
    $region8: #{tpu_custom_call.1} parent=1 // pred_region
      %29 = vsyncadd [#allocation6], 0
      %s30 = sshll.u32 %s1, 4
      %s31 = int_to_ptr.hbm [resolvable:$true] %s30
      %s32 = sshll.u32 [#allocation5], 4
      %s33 = int_to_ptr.vmem [resolvable:$true] %s32
      %38 = dma.hbm_to_vmem [thread:$0]  %s31, 128, %s33, [#allocation6], 64, 64, 4
    $region9: #{tpu_custom_call.1} parent=1 // pred_fallthru
      _
    // Predicated region
    $region10: #{tpu_custom_call.1} parent=1 // pred_check
      _
    $region11: #{tpu_custom_call.1} parent=1 // pred_check_branch
      %40 = sbr.rel (0) target = $region13
    $region12: #{tpu_custom_call.1} parent=1 // pred_region
      %42 = dma.done [#allocation3], 256
    $region13: #{tpu_custom_call.1} parent=1 // pred_fallthru
      _
    // Predicated region
    $region14: #{tpu_custom_call.1} parent=1 // pred_check
      _
    $region15: #{tpu_custom_call.1} parent=1 // pred_check_branch
      %44 = sbr.rel (0) target = $region17
    $region16: #{tpu_custom_call.1} parent=1 // pred_region
      %46 = dma.done [#allocation6], 128
    $region17: #{tpu_custom_call.1} parent=1 // pred_fallthru
      _
    %v47 = vld [vmem:[#allocation2] sm:$0xff]
    %v48 = vld [vmem:[#allocation2 + $0x8] sm:$0xff]
    %v49 = vld [vmem:[#allocation5] sm:$0xf]
    %v50 = vld [vmem:[#allocation5 + $0x4] sm:$0xf]
    %vm51 = vcmask 261120
    %v52 = vsel %vm51, %v47, 0.0
    %v53 = vrot.slane %v52, 4
    %v54 = vadd.f32 %v52, %v53
    %v55 = vrot.slane %v54, 2
    %v56 = vadd.f32 %v54, %v55
    %v57 = vrot.slane %v56, 1
    %v58 = vadd.f32 %v56, %v57
    %v59 = vsel %vm51, %v48, 0.0
    %v60 = vrot.slane %v59, 4
    %v61 = vadd.f32 %v59, %v60
    %v62 = vrot.slane %v61, 2
    %v63 = vadd.f32 %v61, %v62
    %v64 = vrot.slane %v63, 1
    %v65 = vadd.f32 %v63, %v64
    %v66 = vmul.f32 %v58, 0.125
    %v67 = vmul.f32 %v65, 0.125
    %vm68 = vcmask 257024
    %v69 = vsel %vm68, %v49, 0.0
    %v70 = vrot.slane %v69, 4
    %v71 = vadd.f32 %v69, %v70
    %v72 = vrot.slane %v71, 2
    %v73 = vadd.f32 %v71, %v72
    %v74 = vrot.slane %v73, 1
    %v75 = vadd.f32 %v73, %v74
    %v76 = vsel %vm68, %v50, 0.0
    %v77 = vrot.slane %v76, 4
    %v78 = vadd.f32 %v76, %v77
    %v79 = vrot.slane %v78, 2
    %v80 = vadd.f32 %v78, %v79
    %v81 = vrot.slane %v80, 1
    %v82 = vadd.f32 %v80, %v81
    %v83 = vmul.f32 %v75, 0.25
    %v84 = vmul.f32 %v82, 0.25
    %vm87 = vcmask 1041409
    %v88 = vsel %vm87, %v67, %v66
    %vm90 = vcmask 254976
    %91 = vst.msk [vmem:[#allocation7] sm:$0x3] %vm90, %v88
    %v94 = vsel %vm87, %v84, %v83
    %96 = vst.msk [vmem:[#allocation8] sm:$0x3] %vm90, %v94
    %97 = vrot.lane.b32.xlu0 %v88, 32
    %v98 = vpop.permute.xlu0 %97
    %vm100 = vcmask 517376
    %101 = vst.msk [vmem:[#allocation7] sm:$0x3] %vm100, %v98
    %102 = vrot.lane.b32.xlu0 %v94, 32
    %v103 = vpop.permute.xlu0 %102
    %105 = vst.msk [vmem:[#allocation8] sm:$0x3] %vm100, %v103
    %106 = vrot.lane.b32.xlu0 %v88, 64
    %v107 = vpop.permute.xlu0 %106
    %vm109 = vcmask 779776
    %110 = vst.msk [vmem:[#allocation7] sm:$0x3] %vm109, %v107
    %111 = vrot.lane.b32.xlu0 %v94, 64
    %v112 = vpop.permute.xlu0 %111
    %114 = vst.msk [vmem:[#allocation8] sm:$0x3] %vm109, %v112
    %115 = vrot.lane.b32.xlu0 %v88, 96
    %v116 = vpop.permute.xlu0 %115
    %vm118 = vcmask 1042176
    %119 = vst.msk [vmem:[#allocation7] sm:$0x3] %vm118, %v116
    %120 = vrot.lane.b32.xlu0 %v94, 96
    %v121 = vpop.permute.xlu0 %120
    %123 = vst.msk [vmem:[#allocation8] sm:$0x3] %vm118, %v121
    // Predicated region
    $region18: #{tpu_custom_call.1} parent=1 // pred_check
      _
    $region19: #{tpu_custom_call.1} parent=1 // pred_check_branch
      %125 = sbr.rel (0) target = $region21
    $region20: #{tpu_custom_call.1} parent=1 // pred_region
      %127 = vsyncadd [#allocation4], 0
      %s129 = sshll.u32 [#allocation7], 4
      %s130 = int_to_ptr.vmem [resolvable:$true] %s129
      %s131 = sshll.u32 %s2, 4
      %s132 = int_to_ptr.hbm [resolvable:$true] %s131
      %134 = dma.vmem_to_hbm [thread:$0]  %s130, 32, %s132, [#allocation4]
    $region21: #{tpu_custom_call.1} parent=1 // pred_fallthru
      _
    // Predicated region
    $region22: #{tpu_custom_call.1} parent=1 // pred_check
      _
    $region23: #{tpu_custom_call.1} parent=1 // pred_check_branch
      %136 = sbr.rel (0) target = $region25
    $region24: #{tpu_custom_call.1} parent=1 // pred_region
      %138 = vsyncadd [#allocation9], 0
      %s140 = sshll.u32 [#allocation8], 4
      %s141 = int_to_ptr.vmem [resolvable:$true] %s140
      %s142 = sshll.u32 %s3, 4
      %s143 = int_to_ptr.hbm [resolvable:$true] %s142
      %145 = dma.vmem_to_hbm [thread:$0]  %s141, 32, %s143, [#allocation9]
    $region25: #{tpu_custom_call.1} parent=1 // pred_fallthru
      _
    // Predicated region
    $region26: #{tpu_custom_call.1} parent=1 // pred_check
      _
    $region27: #{tpu_custom_call.1} parent=1 // pred_check_branch
      %147 = sbr.rel (0) target = $region29
    $region28: #{tpu_custom_call.1} parent=1 // pred_region
      %149 = dma.done [#allocation4], 32
    $region29: #{tpu_custom_call.1} parent=1 // pred_fallthru
      _
    // Predicated region
    $region30: #{tpu_custom_call.1} parent=1 // pred_check
      _
    $region31: #{tpu_custom_call.1} parent=1 // pred_check_branch
      %151 = sbr.rel (0) target = $region33
    $region32: #{tpu_custom_call.1} parent=1 // pred_region
      %153 = dma.done [#allocation9], 32
    $region33: #{tpu_custom_call.1} parent=1 // pred_fallthru
      _
    %154 = vsyncpa [#allocation3], 1
    %155 = vsyncpa [#allocation6], 1
    %156 = vsyncpa [#allocation4], 1
    %157 = vsyncpa [#allocation9], 1

</llo_original>
